<compile_context>
chip_gen: v5e
topology: v5e:2x2
jax: 0.10.0
libtpu: 0.0.40
codegen_flags: <defaults>
</compile_context>

<pallas_src>
import numpy as np
import jax
import jax.numpy as jnp
from jax.experimental import pallas as pl
from jax.experimental.pallas import tpu as pltpu


# ---------------------------------------------------------------------------
# Host-side JPEG constants (standard Annex-K quantization tables, DCT matrix).
# ---------------------------------------------------------------------------
_LUMA_Q = np.array([
    [16, 11, 10, 16, 24, 40, 51, 61],
    [12, 12, 14, 19, 26, 58, 60, 55],
    [14, 13, 16, 24, 40, 57, 69, 56],
    [14, 17, 22, 29, 51, 87, 80, 62],
    [18, 22, 37, 56, 68, 109, 103, 77],
    [24, 35, 55, 64, 81, 104, 113, 92],
    [49, 64, 78, 87, 103, 121, 120, 101],
    [72, 92, 95, 98, 112, 100, 103, 99],
], dtype=np.float64)

_CHROMA_Q = np.array([
    [17, 18, 24, 47, 99, 99, 99, 99],
    [18, 21, 26, 66, 99, 99, 99, 99],
    [24, 26, 56, 99, 99, 99, 99, 99],
    [47, 66, 99, 99, 99, 99, 99, 99],
    [99, 99, 99, 99, 99, 99, 99, 99],
    [99, 99, 99, 99, 99, 99, 99, 99],
    [99, 99, 99, 99, 99, 99, 99, 99],
    [99, 99, 99, 99, 99, 99, 99, 99],
], dtype=np.float64)


def _quality_scaled_table(base, quality):
    """libjpeg-style quality scaling of a base quantization table (float64)."""
    quality = max(1, min(100, int(quality)))
    scale = 5000 // quality if quality < 50 else 200 - 2 * quality
    q = np.floor((base * scale + 50.0) / 100.0)
    return np.clip(q, 1.0, 255.0)


def _dct_matrix(n=8):
    """Orthonormal DCT-II matrix D so that the 2-D JPEG DCT is D @ B @ D.T."""
    k = np.arange(n)[:, None].astype(np.float64)
    i = np.arange(n)[None, :].astype(np.float64)
    d = np.sqrt(2.0 / n) * np.cos(np.pi * (2.0 * i + 1.0) * k / (2.0 * n))
    d[0, :] = np.sqrt(1.0 / n)
    return d


def _build_constants(quality):
    """128x128 two-block DCT matrices with the quant scales folded in.

    Row layout: each 128-lane row holds TWO flattened 8x8 blocks, so the
    matrices are block-diag(Kron(D,D)^T) / block-diag(Kron(D,D)) replicated
    twice, pre-scaled by 1/q (forward) and q (inverse) in float64.
    """
    d = _dct_matrix(8)
    k64 = np.kron(d, d)          # coef_vec = k64 @ block_vec (row-major flatten)
    mf64 = k64.T                 # row form: coef_row = block_row @ mf64
    mi64 = k64                   # row form: rec_row  = deq_row  @ mi64

    def blockdiag2(m):
        out = np.zeros((128, 128), np.float64)
        out[:64, :64] = m
        out[64:, 64:] = m
        return out

    mf = blockdiag2(mf64)
    mi = blockdiag2(mi64)

    qy = np.tile(_quality_scaled_table(_LUMA_Q, quality).reshape(-1), 2)    # (128,)
    qc = np.tile(_quality_scaled_table(_CHROMA_Q, quality).reshape(-1), 2)  # (128,)

    mf_y = (mf / qy[None, :]).astype(np.float32)   # forward DCT + quantize (luma)
    mf_c = (mf / qc[None, :]).astype(np.float32)   # forward DCT + quantize (chroma)
    mi_y = (qy[:, None] * mi).astype(np.float32)   # dequantize + inverse DCT (luma)
    mi_c = (qc[:, None] * mi).astype(np.float32)   # dequantize + inverse DCT (chroma)
    return (jnp.asarray(mf_y), jnp.asarray(mf_c),
            jnp.asarray(mi_y), jnp.asarray(mi_c))


def _pick_row_tile(rtot, align=16, max_rows=1024):
    """VMEM-safe (tile, padded_total) picker for the flattened row axis."""
    ra = -(-rtot // align) * align
    if ra <= max_rows:
        return ra, ra                      # single full-extent tile
    t = (max_rows // align) * align
    while t >= 128:
        if ra % t == 0:
            return t, ra                   # exact divisor, <= 15 pad rows
        t -= align
    tile = (max_rows // align) * align     # no decent divisor: pad to tile multiple
    return tile, -(-ra // tile) * tile


# ---------------------------------------------------------------------------
# Pallas kernel: JPEG round-trip approximation + pointwise "model" conv.
# Refs:
#   x_ref    (3, R_tile, 128)  bf16, round(x*255) in [0,255], block-row layout
#   mfy/mfc  (128, 128)        forward DCT with 1/q folded in (luma / chroma)
#   miy/mic  (128, 128)        inverse DCT with q folded in   (luma / chroma)
#   w_ref    (3, Cout, 1, 128) conv weights (already scaled by 1/255)
#   b_ref    (Cout, 1, 128)    conv bias
#   o_ref    (Cout, R_tile, 128) f32 output
# ---------------------------------------------------------------------------
def jpeg_model_kernel(x_ref, mfy_ref, mfc_ref, miy_ref, mic_ref,
                      w_ref, b_ref, o_ref):
    x = x_ref[...].astype(jnp.float32)               # exact: integers 0..255
    r = x[0]
    g = x[1]
    bch = x[2]

    # RGB -> YCbCr (JFIF), already level-shifted by -128 for the DCT.
    y = 0.299 * r + 0.587 * g + 0.114 * bch - 128.0
    cb = -0.168736 * r - 0.331264 * g + 0.5 * bch
    cr = 0.5 * r - 0.418688 * g - 0.081312 * bch

    # Luma round trip: quant scales are folded into the matrices, so this is
    # just matmul -> round -> matmul on the MXU.
    y2 = jnp.dot(
        jnp.round(jnp.dot(y, mfy_ref[...], preferred_element_type=jnp.float32)),
        miy_ref[...], preferred_element_type=jnp.float32) + 128.0

    # Chroma round trip: Cb/Cr share the chroma matrices, so concatenate them
    # into one (2*rows, 128) operand and run a single matmul per stage.
    rows = y.shape[0]
    cbcr = jnp.concatenate([cb, cr], axis=0)
    rec = jnp.dot(
        jnp.round(jnp.dot(cbcr, mfc_ref[...], preferred_element_type=jnp.float32)),
        mic_ref[...], preferred_element_type=jnp.float32)
    cb2 = rec[:rows]
    cr2 = rec[rows:]

    # YCbCr -> RGB, clamp to uint8 range. 1/255 is folded into the conv
    # weights, so rr/gg/bb stay in [0, 255].
    rr = jnp.clip(jnp.round(y2 + 1.402 * cr2), 0.0, 255.0)
    gg = jnp.clip(jnp.round(y2 - 0.344136 * cb2 - 0.714136 * cr2), 0.0, 255.0)
    bb = jnp.clip(jnp.round(y2 + 1.772 * cb2), 0.0, 255.0)

    # Downstream "model": pointwise 1x1 conv on the VPU via broadcasts.
    wv = w_ref[...]                                  # (3, Cout, 1, 128)
    o_ref[...] = (wv[0] * rr[None, :, :]
                  + wv[1] * gg[None, :, :]
                  + wv[2] * bb[None, :, :]
                  + b_ref[...])


def jpeg_model_forward(x, w, b, quality=1):
    n, c, h, ww = x.shape
    assert c == 3, "JPEG path expects RGB input"
    assert h % 8 == 0 and ww % 8 == 0 and (h * ww) % 128 == 0
    cout = w.shape[0]

    rtot = (n * h * ww) // 128                       # total block rows (batch-flat)
    r_tile, r_pad = _pick_row_tile(rtot)

    mf_y, mf_c, mi_y, mi_c = _build_constants(quality)

    # Fold 1/255 into the conv weights so the kernel never rescales planes.
    w_b = jnp.broadcast_to(
        (jnp.asarray(w, jnp.float32) * (1.0 / 255.0)).T[:, :, None, None],
        (3, cout, 1, 128))
    bias_b = jnp.broadcast_to(
        jnp.asarray(b, jnp.float32).reshape(cout, 1, 1), (cout, 1, 128))

    # uint8 simulation + block-row layout in the XLA wrapper; ship as bf16
    # (integers 0..255 are exact) to halve input HBM traffic. Batch is folded
    # into the row axis so small images still fill the MXU M dimension.
    x255 = jnp.round(x.astype(jnp.float32) * 255.0)
    xb = x255.reshape(n, 3, h // 8, 8, ww // 8, 8)
    xb = jnp.transpose(xb, (1, 0, 2, 4, 3, 5))       # (3, N, H/8, W/8, 8, 8)
    x_blk = xb.reshape(3, rtot, 128).astype(jnp.bfloat16)
    if r_pad != rtot:
        x_blk = jnp.pad(x_blk, ((0, 0), (0, r_pad - rtot), (0, 0)))

    out_blk = pl.pallas_call(
        jpeg_model_kernel,
        out_shape=jax.ShapeDtypeStruct((cout, r_pad, 128), jnp.float32),
        grid_spec=pltpu.PrefetchScalarGridSpec(
            num_scalar_prefetch=0,
            grid=(r_pad // r_tile,),
            in_specs=[
                pl.BlockSpec((3, r_tile, 128), lambda j: (0, j, 0)),
                pl.BlockSpec((128, 128), lambda j: (0, 0)),
                pl.BlockSpec((128, 128), lambda j: (0, 0)),
                pl.BlockSpec((128, 128), lambda j: (0, 0)),
                pl.BlockSpec((128, 128), lambda j: (0, 0)),
                pl.BlockSpec((3, cout, 1, 128), lambda j: (0, 0, 0, 0)),
                pl.BlockSpec((cout, 1, 128), lambda j: (0, 0, 0)),
            ],
            out_specs=pl.BlockSpec((cout, r_tile, 128), lambda j: (0, j, 0)),
        ),
        compiler_params=pltpu.CompilerParams(
            dimension_semantics=("parallel",),
            vmem_limit_bytes=48 * 1024 * 1024),
    )(x_blk, mf_y, mf_c, mi_y, mi_c, w_b, bias_b)

    # Un-block back to (N, Cout, H, W) to honour the module's output contract.
    out_blk = out_blk[:, :rtot, :]
    yb = out_blk.reshape(cout, n, h // 8, ww // 8, 8, 8)
    yb = jnp.transpose(yb, (1, 0, 2, 4, 3, 5))
    return yb.reshape(n, cout, h, ww)


if __name__ == "__main__":
    N, C, H, W = 2, 3, 16, 16          # H, W multiples of 8; H*W multiple of 128
    COUT = 8
    QUALITY = 1                        # matches JPEGModel(quality=1)

    key = jax.random.PRNGKey(0)
    kx, kw, kb = jax.random.split(key, 3)
    x = jax.random.uniform(kx, (N, C, H, W), dtype=jnp.float32)
    w = jax.random.normal(kw, (COUT, C), dtype=jnp.float32) * 0.1
    b = jax.random.normal(kb, (COUT,), dtype=jnp.float32) * 0.1

    out = jpeg_model_forward(x, w, b, quality=QUALITY)
    jax.block_until_ready(out)
    assert out.shape == (N, COUT, H, W)
    print("KERNEL_OK")
</pallas_src>

<mosaic_0001>
module attributes {stable_mosaic.version = 11 : i64} {
  func.func @jpeg_model_kernel(%arg0: i32, %arg1: memref<3x16x128xbf16, #tpu.memory_space<vmem>>, %arg2: memref<128x128xf32, #tpu.memory_space<vmem>>, %arg3: memref<128x128xf32, #tpu.memory_space<vmem>>, %arg4: memref<128x128xf32, #tpu.memory_space<vmem>>, %arg5: memref<128x128xf32, #tpu.memory_space<vmem>>, %arg6: memref<3x8x1x128xf32, #tpu.memory_space<vmem>>, %arg7: memref<8x1x128xf32, #tpu.memory_space<vmem>>, %arg8: memref<8x16x128xf32, #tpu.memory_space<vmem>>) attributes {dimension_semantics = [#tpu.dimension_semantics<parallel>], iteration_bounds = array<i64: 1>, scalar_prefetch = 0 : i64, scratch_operands = 0 : i64, tpu.core_type = #tpu.core_type<tc>, window_params = [{transform_indices = @transform_0, window_bounds = array<i64: 3, 16, 128>}, {pipeline_mode = #tpu.pipeline_mode<synchronous>, transform_indices = @transform_1, window_bounds = array<i64: 128, 128>}, {pipeline_mode = #tpu.pipeline_mode<synchronous>, transform_indices = @transform_2, window_bounds = array<i64: 128, 128>}, {pipeline_mode = #tpu.pipeline_mode<synchronous>, transform_indices = @transform_3, window_bounds = array<i64: 128, 128>}, {pipeline_mode = #tpu.pipeline_mode<synchronous>, transform_indices = @transform_4, window_bounds = array<i64: 128, 128>}, {pipeline_mode = #tpu.pipeline_mode<synchronous>, transform_indices = @transform_5, window_bounds = array<i64: 3, 8, 1, 128>}, {pipeline_mode = #tpu.pipeline_mode<synchronous>, transform_indices = @transform_6, window_bounds = array<i64: 8, 1, 128>}, {transform_indices = @transform_7, window_bounds = array<i64: 8, 16, 128>}]} {
    %c0 = arith.constant 0 : index
    %c0_0 = arith.constant 0 : index
    %c0_1 = arith.constant 0 : index
    %0 = vector.load %arg1[%c0, %c0_0, %c0_1] : memref<3x16x128xbf16, #tpu.memory_space<vmem>>, vector<3x16x128xbf16>
    %1 = arith.extf %0 : vector<3x16x128xbf16> to vector<3x16x128xf32>
    %2 = vector.extract_strided_slice %1 {offsets = [0, 0, 0], sizes = [1, 16, 128], strides = [1, 1, 1]} : vector<3x16x128xf32> to vector<1x16x128xf32>
    %3 = vector.shape_cast %2 : vector<1x16x128xf32> to vector<16x128xf32>
    %4 = vector.extract_strided_slice %1 {offsets = [1, 0, 0], sizes = [1, 16, 128], strides = [1, 1, 1]} : vector<3x16x128xf32> to vector<1x16x128xf32>
    %5 = vector.shape_cast %4 : vector<1x16x128xf32> to vector<16x128xf32>
    %6 = vector.extract_strided_slice %1 {offsets = [2, 0, 0], sizes = [1, 16, 128], strides = [1, 1, 1]} : vector<3x16x128xf32> to vector<1x16x128xf32>
    %7 = vector.shape_cast %6 : vector<1x16x128xf32> to vector<16x128xf32>
    %cst = arith.constant 2.990000e-01 : f32
    %8 = vector.broadcast %cst : f32 to vector<16x128xf32>
    %9 = arith.mulf %8, %3 : vector<16x128xf32>
    %cst_2 = arith.constant 5.870000e-01 : f32
    %10 = vector.broadcast %cst_2 : f32 to vector<16x128xf32>
    %11 = arith.mulf %10, %5 : vector<16x128xf32>
    %12 = arith.addf %9, %11 : vector<16x128xf32>
    %cst_3 = arith.constant 1.140000e-01 : f32
    %13 = vector.broadcast %cst_3 : f32 to vector<16x128xf32>
    %14 = arith.mulf %13, %7 : vector<16x128xf32>
    %15 = arith.addf %12, %14 : vector<16x128xf32>
    %cst_4 = arith.constant 1.280000e+02 : f32
    %16 = vector.broadcast %cst_4 : f32 to vector<16x128xf32>
    %17 = arith.subf %15, %16 : vector<16x128xf32>
    %cst_5 = arith.constant -1.687360e-01 : f32
    %18 = vector.broadcast %cst_5 : f32 to vector<16x128xf32>
    %19 = arith.mulf %18, %3 : vector<16x128xf32>
    %cst_6 = arith.constant 3.312640e-01 : f32
    %20 = vector.broadcast %cst_6 : f32 to vector<16x128xf32>
    %21 = arith.mulf %20, %5 : vector<16x128xf32>
    %22 = arith.subf %19, %21 : vector<16x128xf32>
    %cst_7 = arith.constant 5.000000e-01 : f32
    %23 = vector.broadcast %cst_7 : f32 to vector<16x128xf32>
    %24 = arith.mulf %23, %7 : vector<16x128xf32>
    %25 = arith.addf %22, %24 : vector<16x128xf32>
    %cst_8 = arith.constant 5.000000e-01 : f32
    %26 = vector.broadcast %cst_8 : f32 to vector<16x128xf32>
    %27 = arith.mulf %26, %3 : vector<16x128xf32>
    %cst_9 = arith.constant 4.186880e-01 : f32
    %28 = vector.broadcast %cst_9 : f32 to vector<16x128xf32>
    %29 = arith.mulf %28, %5 : vector<16x128xf32>
    %30 = arith.subf %27, %29 : vector<16x128xf32>
    %cst_10 = arith.constant 8.131200e-02 : f32
    %31 = vector.broadcast %cst_10 : f32 to vector<16x128xf32>
    %32 = arith.mulf %31, %7 : vector<16x128xf32>
    %33 = arith.subf %30, %32 : vector<16x128xf32>
    %c0_11 = arith.constant 0 : index
    %c0_12 = arith.constant 0 : index
    %34 = vector.load %arg2[%c0_11, %c0_12] : memref<128x128xf32, #tpu.memory_space<vmem>>, vector<128x128xf32>
    %cst_13 = arith.constant dense<0.000000e+00> : vector<16x128xf32>
    %35 = tpu.matmul %17, %34, %cst_13 {dimension_numbers = #tpu.dot_dimension_numbers<[1], [0], [0], [1], [0, 0, 1, 1], [], []>} : vector<16x128xf32>, vector<128x128xf32>, vector<16x128xf32> -> vector<16x128xf32>
    %36 = math.roundeven %35 : vector<16x128xf32>
    %c0_14 = arith.constant 0 : index
    %c0_15 = arith.constant 0 : index
    %37 = vector.load %arg4[%c0_14, %c0_15] : memref<128x128xf32, #tpu.memory_space<vmem>>, vector<128x128xf32>
    %cst_16 = arith.constant dense<0.000000e+00> : vector<16x128xf32>
    %38 = tpu.matmul %36, %37, %cst_16 {dimension_numbers = #tpu.dot_dimension_numbers<[1], [0], [0], [1], [0, 0, 1, 1], [], []>} : vector<16x128xf32>, vector<128x128xf32>, vector<16x128xf32> -> vector<16x128xf32>
    %cst_17 = arith.constant 1.280000e+02 : f32
    %39 = vector.broadcast %cst_17 : f32 to vector<16x128xf32>
    %40 = arith.addf %38, %39 : vector<16x128xf32>
    %41 = tpu.concatenate %25, %33 in 0 : vector<16x128xf32>, vector<16x128xf32> -> vector<32x128xf32>
    %c0_18 = arith.constant 0 : index
    %c0_19 = arith.constant 0 : index
    %42 = vector.load %arg3[%c0_18, %c0_19] : memref<128x128xf32, #tpu.memory_space<vmem>>, vector<128x128xf32>
    %cst_20 = arith.constant dense<0.000000e+00> : vector<32x128xf32>
    %43 = tpu.matmul %41, %42, %cst_20 {dimension_numbers = #tpu.dot_dimension_numbers<[1], [0], [0], [1], [0, 0, 1, 1], [], []>} : vector<32x128xf32>, vector<128x128xf32>, vector<32x128xf32> -> vector<32x128xf32>
    %44 = math.roundeven %43 : vector<32x128xf32>
    %c0_21 = arith.constant 0 : index
    %c0_22 = arith.constant 0 : index
    %45 = vector.load %arg5[%c0_21, %c0_22] : memref<128x128xf32, #tpu.memory_space<vmem>>, vector<128x128xf32>
    %cst_23 = arith.constant dense<0.000000e+00> : vector<32x128xf32>
    %46 = tpu.matmul %44, %45, %cst_23 {dimension_numbers = #tpu.dot_dimension_numbers<[1], [0], [0], [1], [0, 0, 1, 1], [], []>} : vector<32x128xf32>, vector<128x128xf32>, vector<32x128xf32> -> vector<32x128xf32>
    %47 = vector.extract_strided_slice %46 {offsets = [0, 0], sizes = [16, 128], strides = [1, 1]} : vector<32x128xf32> to vector<16x128xf32>
    %48 = vector.extract_strided_slice %46 {offsets = [16, 0], sizes = [16, 128], strides = [1, 1]} : vector<32x128xf32> to vector<16x128xf32>
    %cst_24 = arith.constant 1.402000e+00 : f32
    %49 = vector.broadcast %cst_24 : f32 to vector<16x128xf32>
    %50 = arith.mulf %49, %48 : vector<16x128xf32>
    %51 = arith.addf %40, %50 : vector<16x128xf32>
    %52 = math.roundeven %51 : vector<16x128xf32>
    %cst_25 = arith.constant 0.000000e+00 : f32
    %cst_26 = arith.constant 2.550000e+02 : f32
    %53 = vector.broadcast %cst_25 : f32 to vector<16x128xf32>
    %54 = arith.maximumf %53, %52 : vector<16x128xf32>
    %55 = vector.broadcast %cst_26 : f32 to vector<16x128xf32>
    %56 = arith.minimumf %55, %54 : vector<16x128xf32>
    %cst_27 = arith.constant 3.441360e-01 : f32
    %57 = vector.broadcast %cst_27 : f32 to vector<16x128xf32>
    %58 = arith.mulf %57, %47 : vector<16x128xf32>
    %59 = arith.subf %40, %58 : vector<16x128xf32>
    %cst_28 = arith.constant 7.141360e-01 : f32
    %60 = vector.broadcast %cst_28 : f32 to vector<16x128xf32>
    %61 = arith.mulf %60, %48 : vector<16x128xf32>
    %62 = arith.subf %59, %61 : vector<16x128xf32>
    %63 = math.roundeven %62 : vector<16x128xf32>
    %cst_29 = arith.constant 0.000000e+00 : f32
    %cst_30 = arith.constant 2.550000e+02 : f32
    %64 = vector.broadcast %cst_29 : f32 to vector<16x128xf32>
    %65 = arith.maximumf %64, %63 : vector<16x128xf32>
    %66 = vector.broadcast %cst_30 : f32 to vector<16x128xf32>
    %67 = arith.minimumf %66, %65 : vector<16x128xf32>
    %cst_31 = arith.constant 1.772000e+00 : f32
    %68 = vector.broadcast %cst_31 : f32 to vector<16x128xf32>
    %69 = arith.mulf %68, %47 : vector<16x128xf32>
    %70 = arith.addf %40, %69 : vector<16x128xf32>
    %71 = math.roundeven %70 : vector<16x128xf32>
    %cst_32 = arith.constant 0.000000e+00 : f32
    %cst_33 = arith.constant 2.550000e+02 : f32
    %72 = vector.broadcast %cst_32 : f32 to vector<16x128xf32>
    %73 = arith.maximumf %72, %71 : vector<16x128xf32>
    %74 = vector.broadcast %cst_33 : f32 to vector<16x128xf32>
    %75 = arith.minimumf %74, %73 : vector<16x128xf32>
    %c0_34 = arith.constant 0 : index
    %c0_35 = arith.constant 0 : index
    %c0_36 = arith.constant 0 : index
    %c0_37 = arith.constant 0 : index
    %76 = vector.load %arg6[%c0_34, %c0_35, %c0_36, %c0_37] : memref<3x8x1x128xf32, #tpu.memory_space<vmem>>, vector<3x8x1x128xf32>
    %77 = vector.extract_strided_slice %76 {offsets = [0, 0, 0, 0], sizes = [1, 8, 1, 128], strides = [1, 1, 1, 1]} : vector<3x8x1x128xf32> to vector<1x8x1x128xf32>
    %78 = vector.shape_cast %77 : vector<1x8x1x128xf32> to vector<8x1x128xf32>
    %79 = vector.shape_cast %56 : vector<16x128xf32> to vector<1x16x128xf32>
    %80 = vector.broadcast %78 : vector<8x1x128xf32> to vector<8x16x128xf32>
    %81 = vector.broadcast %79 : vector<1x16x128xf32> to vector<8x16x128xf32>
    %82 = arith.mulf %80, %81 : vector<8x16x128xf32>
    %83 = vector.extract_strided_slice %76 {offsets = [1, 0, 0, 0], sizes = [1, 8, 1, 128], strides = [1, 1, 1, 1]} : vector<3x8x1x128xf32> to vector<1x8x1x128xf32>
    %84 = vector.shape_cast %83 : vector<1x8x1x128xf32> to vector<8x1x128xf32>
    %85 = vector.shape_cast %67 : vector<16x128xf32> to vector<1x16x128xf32>
    %86 = vector.broadcast %84 : vector<8x1x128xf32> to vector<8x16x128xf32>
    %87 = vector.broadcast %85 : vector<1x16x128xf32> to vector<8x16x128xf32>
    %88 = arith.mulf %86, %87 : vector<8x16x128xf32>
    %89 = arith.addf %82, %88 : vector<8x16x128xf32>
    %90 = vector.extract_strided_slice %76 {offsets = [2, 0, 0, 0], sizes = [1, 8, 1, 128], strides = [1, 1, 1, 1]} : vector<3x8x1x128xf32> to vector<1x8x1x128xf32>
    %91 = vector.shape_cast %90 : vector<1x8x1x128xf32> to vector<8x1x128xf32>
    %92 = vector.shape_cast %75 : vector<16x128xf32> to vector<1x16x128xf32>
    %93 = vector.broadcast %91 : vector<8x1x128xf32> to vector<8x16x128xf32>
    %94 = vector.broadcast %92 : vector<1x16x128xf32> to vector<8x16x128xf32>
    %95 = arith.mulf %93, %94 : vector<8x16x128xf32>
    %96 = arith.addf %89, %95 : vector<8x16x128xf32>
    %c0_38 = arith.constant 0 : index
    %c0_39 = arith.constant 0 : index
    %c0_40 = arith.constant 0 : index
    %97 = vector.load %arg7[%c0_38, %c0_39, %c0_40] : memref<8x1x128xf32, #tpu.memory_space<vmem>>, vector<8x1x128xf32>
    %98 = vector.broadcast %97 : vector<8x1x128xf32> to vector<8x16x128xf32>
    %99 = arith.addf %96, %98 : vector<8x16x128xf32>
    %c0_41 = arith.constant 0 : index
    %c0_42 = arith.constant 0 : index
    %c0_43 = arith.constant 0 : index
    %100 = vector.load %arg8[%c0_41, %c0_42, %c0_43] : memref<8x16x128xf32, #tpu.memory_space<vmem>>, vector<8x16x128xf32>
    tpu.vector_store %arg8[%c0_41, %c0_42, %c0_43], %99 {strides = array<i32>} : memref<8x16x128xf32, #tpu.memory_space<vmem>>, vector<8x16x128xf32>,
    return
  }
  func.func @transform_0(%arg0: i32) -> (i32, i32, i32) {
    %c0_i32 = arith.constant 0 : i32
    %c0_i32_0 = arith.constant 0 : i32
    %c0_i32_1 = arith.constant 0 : i32
    return %c0_i32, %arg0, %c0_i32_0 : i32, i32, i32
  }
  func.func @transform_1(%arg0: i32) -> (i32, i32) {
    %c0_i32 = arith.constant 0 : i32
    %c0_i32_0 = arith.constant 0 : i32
    %c0_i32_1 = arith.constant 0 : i32
    return %c0_i32, %c0_i32_0 : i32, i32
  }
  func.func @transform_2(%arg0: i32) -> (i32, i32) {
    %c0_i32 = arith.constant 0 : i32
    %c0_i32_0 = arith.constant 0 : i32
    %c0_i32_1 = arith.constant 0 : i32
    return %c0_i32, %c0_i32_0 : i32, i32
  }
  func.func @transform_3(%arg0: i32) -> (i32, i32) {
    %c0_i32 = arith.constant 0 : i32
    %c0_i32_0 = arith.constant 0 : i32
    %c0_i32_1 = arith.constant 0 : i32
    return %c0_i32, %c0_i32_0 : i32, i32
  }
  func.func @transform_4(%arg0: i32) -> (i32, i32) {
    %c0_i32 = arith.constant 0 : i32
    %c0_i32_0 = arith.constant 0 : i32
    %c0_i32_1 = arith.constant 0 : i32
    return %c0_i32, %c0_i32_0 : i32, i32
  }
  func.func @transform_5(%arg0: i32) -> (i32, i32, i32, i32) {
    %c0_i32 = arith.constant 0 : i32
    %c0_i32_0 = arith.constant 0 : i32
    %c0_i32_1 = arith.constant 0 : i32
    %c0_i32_2 = arith.constant 0 : i32
    %c0_i32_3 = arith.constant 0 : i32
    return %c0_i32, %c0_i32_0, %c0_i32_1, %c0_i32_2 : i32, i32, i32, i32
  }
  func.func @transform_6(%arg0: i32) -> (i32, i32, i32) {
    %c0_i32 = arith.constant 0 : i32
    %c0_i32_0 = arith.constant 0 : i32
    %c0_i32_1 = arith.constant 0 : i32
    %c0_i32_2 = arith.constant 0 : i32
    return %c0_i32, %c0_i32_0, %c0_i32_1 : i32, i32, i32
  }
  func.func @transform_7(%arg0: i32) -> (i32, i32, i32) {
    %c0_i32 = arith.constant 0 : i32
    %c0_i32_0 = arith.constant 0 : i32
    %c0_i32_1 = arith.constant 0 : i32
    return %c0_i32, %arg0, %c0_i32_0 : i32, i32, i32
  }
}

</mosaic_0001>

<llo_original>
// kernel: tpu_custom_call.1
$region0: #{tpu_custom_call.1}
  #allocation0 [shape = 'u32[]', space=smem, size = 0x4, offset = 0x4, fixed_abs, tag = 'smem constant byte address 0x4 - core index']
  #allocation1 [shape = 'u32[72,128]{1,0:T(1,128)}', space=vmem, size = 0x9000, scoped, tag = 'internal scratch']
  %s0 = inlined_call_operand.hbm [shape: bf16[3,16,128], index: 0, kind: input, shape index: {}]
  %s1 = inlined_call_operand.hbm [shape: f32[128,128], index: 1, kind: input, shape index: {}]
  %s2 = inlined_call_operand.hbm [shape: f32[128,128], index: 2, kind: input, shape index: {}]
  %s3 = inlined_call_operand.hbm [shape: f32[128,128], index: 3, kind: input, shape index: {}]
  %s4 = inlined_call_operand.hbm [shape: f32[128,128], index: 4, kind: input, shape index: {}]
  %s5 = inlined_call_operand.hbm [shape: f32[3,8,1,128], index: 5, kind: input, shape index: {}]
  %s6 = inlined_call_operand.hbm [shape: f32[8,1,128], index: 6, kind: input, shape index: {}]
  %s7 = inlined_call_operand.hbm [shape: f32[8,16,128], index: 7, kind: output, shape index: {}]
  %s8 = sld [smem:[#allocation0]]
  $region66: #{tpu_custom_call.1} parent=0
    _
  %s10 = ssub.s32 1, %s8
  %s11 = scalar_select 0, %s10, %s8
  $region1: #{tpu_custom_call.1} parent=0
    #allocation2 [shape = 'u8[12288]{0}', space=vmem, size = 0x3000, scoped, tag = 'input window, operand 0, single buffered']
    #allocation3 [shape = 's32[1]{0}', space=sflag, size = 0x4, scoped, tag = 'scoped memory for tpu_custom_call.1']
    #allocation4 [shape = 's32[1]{0}', space=sflag, size = 0x4, scoped, tag = 'scoped memory for tpu_custom_call.1']
    #allocation5 [shape = 'u8[65536]{0}', space=vmem, size = 0x10000, scoped, tag = 'input window, operand 1, single buffered']
    #allocation6 [shape = 's32[1]{0}', space=sflag, size = 0x4, scoped, tag = 'scoped memory for tpu_custom_call.1']
    #allocation7 [shape = 'u8[65536]{0}', space=vmem, size = 0x10000, scoped, tag = 'input window, operand 2, single buffered']
    #allocation8 [shape = 'u8[65536]{0}', space=vmem, size = 0x10000, scoped, tag = 'input window, operand 3, single buffered']
    #allocation9 [shape = 's32[1]{0}', space=sflag, size = 0x4, scoped, tag = 'scoped memory for tpu_custom_call.1']
    #allocation10 [shape = 'u8[65536]{0}', space=vmem, size = 0x10000, scoped, tag = 'input window, operand 4, single buffered']
    #allocation11 [shape = 'u8[12288]{0}', space=vmem, size = 0x3000, scoped, tag = 'input window, operand 5, single buffered']
    #allocation12 [shape = 's32[1]{0}', space=sflag, size = 0x4, scoped, tag = 'scoped memory for tpu_custom_call.1']
    #allocation13 [shape = 'u8[4096]{0}', space=vmem, size = 0x1000, scoped, tag = 'input window, operand 6, single buffered']
    #allocation14 [shape = 'u8[65536]{0}', space=vmem, size = 0x10000, scoped, tag = 'output window, operand 0, single buffered']
    %12 = vsyncpa [#allocation3], 0
    %13 = vsyncpa [#allocation6], 0
    %14 = vsyncpa [#allocation9], 0
    %15 = vsyncpa [#allocation12], 0
    %16 = vsyncpa [#allocation4], 0
    // Predicated region
    $region2: #{tpu_custom_call.1} parent=1 // pred_check
      _
    $region3: #{tpu_custom_call.1} parent=1 // pred_check_branch
      %18 = sbr.rel (0) target = $region5
    $region4: #{tpu_custom_call.1} parent=1 // pred_region
      %20 = vsyncadd [#allocation3], 0
      %s21 = sshll.u32 %s0, 4
      %s22 = int_to_ptr.hbm [resolvable:$true] %s21
      %s23 = sshll.u32 [#allocation2], 4
      %s24 = int_to_ptr.vmem [resolvable:$true] %s23
      %29 = dma.hbm_to_vmem [thread:$0]  %s22, 384, %s24, [#allocation3], 64, 64, 4
    $region5: #{tpu_custom_call.1} parent=1 // pred_fallthru
      _
    // Predicated region
    $region6: #{tpu_custom_call.1} parent=1 // pred_check
      _
    $region7: #{tpu_custom_call.1} parent=1 // pred_check_branch
      %31 = sbr.rel (0) target = $region9
    $region8: #{tpu_custom_call.1} parent=1 // pred_region
      %33 = vsyncadd [#allocation6], 0
      %s34 = sshll.u32 %s1, 4
      %s35 = int_to_ptr.hbm [resolvable:$true] %s34
      %s36 = sshll.u32 [#allocation5], 4
      %s37 = int_to_ptr.vmem [resolvable:$true] %s36
      %42 = dma.hbm_to_vmem [thread:$0]  %s35, 2048, %s37, [#allocation6], 128, 128, 8
    $region9: #{tpu_custom_call.1} parent=1 // pred_fallthru
      _
    // Predicated region
    $region10: #{tpu_custom_call.1} parent=1 // pred_check
      _
    $region11: #{tpu_custom_call.1} parent=1 // pred_check_branch
      %44 = sbr.rel (0) target = $region13
    $region12: #{tpu_custom_call.1} parent=1 // pred_region
      %46 = vsyncadd [#allocation6], 0
      %s47 = sshll.u32 %s2, 4
      %s48 = int_to_ptr.hbm [resolvable:$true] %s47
      %s49 = sshll.u32 [#allocation7], 4
      %s50 = int_to_ptr.vmem [resolvable:$true] %s49
      %55 = dma.hbm_to_vmem [thread:$0]  %s48, 2048, %s50, [#allocation6], 128, 128, 8
    $region13: #{tpu_custom_call.1} parent=1 // pred_fallthru
      _
    // Predicated region
    $region14: #{tpu_custom_call.1} parent=1 // pred_check
      _
    $region15: #{tpu_custom_call.1} parent=1 // pred_check_branch
      %57 = sbr.rel (0) target = $region17
    $region16: #{tpu_custom_call.1} parent=1 // pred_region
      %59 = vsyncadd [#allocation9], 0
      %s60 = sshll.u32 %s3, 4
      %s61 = int_to_ptr.hbm [resolvable:$true] %s60
      %s62 = sshll.u32 [#allocation8], 4
      %s63 = int_to_ptr.vmem [resolvable:$true] %s62
      %68 = dma.hbm_to_vmem [thread:$0]  %s61, 2048, %s63, [#allocation9], 128, 128, 8
    $region17: #{tpu_custom_call.1} parent=1 // pred_fallthru
      _
    // Predicated region
    $region18: #{tpu_custom_call.1} parent=1 // pred_check
      _
    $region19: #{tpu_custom_call.1} parent=1 // pred_check_branch
      %70 = sbr.rel (0) target = $region21
    $region20: #{tpu_custom_call.1} parent=1 // pred_region
      %72 = vsyncadd [#allocation9], 0
      %s73 = sshll.u32 %s4, 4
      %s74 = int_to_ptr.hbm [resolvable:$true] %s73
      %s75 = sshll.u32 [#allocation10], 4
      %s76 = int_to_ptr.vmem [resolvable:$true] %s75
      %81 = dma.hbm_to_vmem [thread:$0]  %s74, 2048, %s76, [#allocation9], 128, 128, 8
    $region21: #{tpu_custom_call.1} parent=1 // pred_fallthru
      _
    // Predicated region
    $region22: #{tpu_custom_call.1} parent=1 // pred_check
      _
    $region23: #{tpu_custom_call.1} parent=1 // pred_check_branch
      %83 = sbr.rel (0) target = $region25
    $region24: #{tpu_custom_call.1} parent=1 // pred_region
      %85 = vsyncadd [#allocation12], 0
      %s86 = sshll.u32 %s5, 4
      %s87 = int_to_ptr.hbm [resolvable:$true] %s86
      %s88 = sshll.u32 [#allocation11], 4
      %s89 = int_to_ptr.vmem [resolvable:$true] %s88
      %94 = dma.hbm_to_vmem [thread:$0]  %s87, 384, %s89, [#allocation12], 16, 16, 1
    $region25: #{tpu_custom_call.1} parent=1 // pred_fallthru
      _
    // Predicated region
    $region26: #{tpu_custom_call.1} parent=1 // pred_check
      _
    $region27: #{tpu_custom_call.1} parent=1 // pred_check_branch
      %96 = sbr.rel (0) target = $region29
    $region28: #{tpu_custom_call.1} parent=1 // pred_region
      %98 = vsyncadd [#allocation12], 0
      %s99 = sshll.u32 %s6, 4
      %s100 = int_to_ptr.hbm [resolvable:$true] %s99
      %s101 = sshll.u32 [#allocation13], 4
      %s102 = int_to_ptr.vmem [resolvable:$true] %s101
      %107 = dma.hbm_to_vmem [thread:$0]  %s100, 128, %s102, [#allocation12], 16, 16, 1
    $region29: #{tpu_custom_call.1} parent=1 // pred_fallthru
      _
    // Predicated region
    $region30: #{tpu_custom_call.1} parent=1 // pred_check
      _
    $region31: #{tpu_custom_call.1} parent=1 // pred_check_branch
      %109 = sbr.rel (0) target = $region33
    $region32: #{tpu_custom_call.1} parent=1 // pred_region
      %111 = dma.done [#allocation3], 384
    $region33: #{tpu_custom_call.1} parent=1 // pred_fallthru
      _
    // Predicated region
    $region34: #{tpu_custom_call.1} parent=1 // pred_check
      _
    $region35: #{tpu_custom_call.1} parent=1 // pred_check_branch
      %113 = sbr.rel (0) target = $region37
    $region36: #{tpu_custom_call.1} parent=1 // pred_region
      %115 = dma.done [#allocation6], 2048
    $region37: #{tpu_custom_call.1} parent=1 // pred_fallthru
      _
    // Predicated region
    $region38: #{tpu_custom_call.1} parent=1 // pred_check
      _
    $region39: #{tpu_custom_call.1} parent=1 // pred_check_branch
      %117 = sbr.rel (0) target = $region41
    $region40: #{tpu_custom_call.1} parent=1 // pred_region
      %119 = dma.done [#allocation6], 2048
    $region41: #{tpu_custom_call.1} parent=1 // pred_fallthru
      _
    // Predicated region
    $region42: #{tpu_custom_call.1} parent=1 // pred_check
      _
    $region43: #{tpu_custom_call.1} parent=1 // pred_check_branch
      %121 = sbr.rel (0) target = $region45
    $region44: #{tpu_custom_call.1} parent=1 // pred_region
      %123 = dma.done [#allocation9], 2048
    $region45: #{tpu_custom_call.1} parent=1 // pred_fallthru
      _
    // Predicated region
    $region46: #{tpu_custom_call.1} parent=1 // pred_check
      _
    $region47: #{tpu_custom_call.1} parent=1 // pred_check_branch
      %125 = sbr.rel (0) target = $region49
    $region48: #{tpu_custom_call.1} parent=1 // pred_region
      %127 = dma.done [#allocation9], 2048
    $region49: #{tpu_custom_call.1} parent=1 // pred_fallthru
      _
    // Predicated region
    $region50: #{tpu_custom_call.1} parent=1 // pred_check
      _
    $region51: #{tpu_custom_call.1} parent=1 // pred_check_branch
      %129 = sbr.rel (0) target = $region53
    $region52: #{tpu_custom_call.1} parent=1 // pred_region
      %131 = dma.done [#allocation12], 384
    $region53: #{tpu_custom_call.1} parent=1 // pred_fallthru
      _
    // Predicated region
    $region54: #{tpu_custom_call.1} parent=1 // pred_check
      _
    $region55: #{tpu_custom_call.1} parent=1 // pred_check_branch
      %133 = sbr.rel (0) target = $region57
    $region56: #{tpu_custom_call.1} parent=1 // pred_region
      %135 = dma.done [#allocation12], 128
    $region57: #{tpu_custom_call.1} parent=1 // pred_fallthru
      _
    %v136 = vld [vmem:[#allocation2] sm:$0xf]
    %v137 = vld [vmem:[#allocation2 + $0x4] sm:$0xf]
    %v138 = vld [vmem:[#allocation2 + $0x8] sm:$0xf]
    %v139 = vld [vmem:[#allocation2 + $0xc] sm:$0xf]
    %v140 = vld [vmem:[#allocation2 + $0x10] sm:$0xf]
    %v141 = vld [vmem:[#allocation2 + $0x14] sm:$0xf]
    %v142 = vunpack.c.l.bf16 %v136
    %v143 = vunpack.c.l.bf16 %v137
    %v144 = vunpack.c.l.bf16 %v138
    %v145 = vunpack.c.l.bf16 %v139
    %v146 = vunpack.c.l.bf16 %v140
    %v147 = vunpack.c.l.bf16 %v141
    %v148 = vmul.f32 %v142, 0.299
    %v149 = vmul.f32 %v143, 0.299
    %v150 = vmul.f32 %v144, 0.587
    %v151 = vmul.f32 %v145, 0.587
    %v152 = vadd.f32 %v148, %v150
    %v153 = vadd.f32 %v149, %v151
    %v154 = vmul.f32 %v146, 0.114
    %v155 = vmul.f32 %v147, 0.114
    %v156 = vadd.f32 %v152, %v154
    %v157 = vadd.f32 %v153, %v155
    %v158 = vsub.f32 %v156, 128.0
    %v159 = vsub.f32 %v157, 128.0
    %v160 = vmul.f32 %v142, -0.168736
    %v161 = vmul.f32 %v143, -0.168736
    %v162 = vmul.f32 %v144, 0.331264
    %v163 = vmul.f32 %v145, 0.331264
    %v164 = vsub.f32 %v160, %v162
    %v165 = vsub.f32 %v161, %v163
    %v166 = vmul.f32 %v146, 0.5
    %v167 = vmul.f32 %v147, 0.5
    %v168 = vadd.f32 %v164, %v166
    %v169 = vadd.f32 %v165, %v167
    %v170 = vmul.f32 %v142, 0.5
    %v171 = vmul.f32 %v143, 0.5
    %v172 = vmul.f32 %v144, 0.418688
    %v173 = vmul.f32 %v145, 0.418688
    %v174 = vsub.f32 %v170, %v172
    %v175 = vsub.f32 %v171, %v173
    %v176 = vmul.f32 %v146, 0.081312
    %v177 = vmul.f32 %v147, 0.081312
    %v178 = vsub.f32 %v174, %v176
    %v179 = vsub.f32 %v175, %v177
    %v180 = vld [vmem:[#allocation5] sm:$0xff]
    %v181 = vld [vmem:[#allocation5 + $0x8] sm:$0xff]
    %v182 = vld [vmem:[#allocation5 + $0x10] sm:$0xff]
    %v183 = vld [vmem:[#allocation5 + $0x18] sm:$0xff]
    %v184 = vld [vmem:[#allocation5 + $0x20] sm:$0xff]
    %v185 = vld [vmem:[#allocation5 + $0x28] sm:$0xff]
    %v186 = vld [vmem:[#allocation5 + $0x30] sm:$0xff]
    %v187 = vld [vmem:[#allocation5 + $0x38] sm:$0xff]
    %v188 = vld [vmem:[#allocation5 + $0x40] sm:$0xff]
    %v189 = vld [vmem:[#allocation5 + $0x48] sm:$0xff]
    %v190 = vld [vmem:[#allocation5 + $0x50] sm:$0xff]
    %v191 = vld [vmem:[#allocation5 + $0x58] sm:$0xff]
    %v192 = vld [vmem:[#allocation5 + $0x60] sm:$0xff]
    %v193 = vld [vmem:[#allocation5 + $0x68] sm:$0xff]
    %v194 = vld [vmem:[#allocation5 + $0x70] sm:$0xff]
    %v195 = vld [vmem:[#allocation5 + $0x78] sm:$0xff]
    %196 = vmatpush.msra.mxu0 %v195
    %197 = vmatpush.msra.mxu0 %v194
    %198 = vmatpush.msra.mxu0 %v193
    %199 = vmatpush.msra.mxu0 %v192
    %200 = vmatpush.msra.mxu0 %v191
    %201 = vmatpush.msra.mxu0 %v190
    %202 = vmatpush.msra.mxu0 %v189
    %203 = vmatpush.msra.mxu0 %v188
    %204 = vmatpush.msra.mxu0 %v187
    %205 = vmatpush.msra.mxu0 %v186
    %206 = vmatpush.msra.mxu0 %v185
    %207 = vmatpush.msra.mxu0 %v184
    %208 = vmatpush.msra.mxu0 %v183
    %209 = vmatpush.msra.mxu0 %v182
    %210 = vmatpush.msra.mxu0 %v181
    %211 = vmatpush.msra.mxu0 %v180
    %212 = vmatmul.f32.gmra.mxu0 %v158
    %v213 = vpop.f32.mrf.mxu0
    %v214 = vadd.f32 0.0, %v213
    %215 = vmatmul.f32.gmra.mxu0 %v159
    %v216 = vpop.f32.mrf.mxu0
    %v217 = vadd.f32 0.0, %v216
    %218 = vdwg.mxu0
    %v219 = vround.ne.pseudo %v214
    %v220 = vround.ne.pseudo %v217
    %v221 = vld [vmem:[#allocation8] sm:$0xff]
    %v222 = vld [vmem:[#allocation8 + $0x8] sm:$0xff]
    %v223 = vld [vmem:[#allocation8 + $0x10] sm:$0xff]
    %v224 = vld [vmem:[#allocation8 + $0x18] sm:$0xff]
    %v225 = vld [vmem:[#allocation8 + $0x20] sm:$0xff]
    %v226 = vld [vmem:[#allocation8 + $0x28] sm:$0xff]
    %v227 = vld [vmem:[#allocation8 + $0x30] sm:$0xff]
    %v228 = vld [vmem:[#allocation8 + $0x38] sm:$0xff]
    %v229 = vld [vmem:[#allocation8 + $0x40] sm:$0xff]
    %v230 = vld [vmem:[#allocation8 + $0x48] sm:$0xff]
    %v231 = vld [vmem:[#allocation8 + $0x50] sm:$0xff]
    %v232 = vld [vmem:[#allocation8 + $0x58] sm:$0xff]
    %v233 = vld [vmem:[#allocation8 + $0x60] sm:$0xff]
    %v234 = vld [vmem:[#allocation8 + $0x68] sm:$0xff]
    %v235 = vld [vmem:[#allocation8 + $0x70] sm:$0xff]
    %v236 = vld [vmem:[#allocation8 + $0x78] sm:$0xff]
    %237 = vmatpush.msra.mxu0 %v236
    %238 = vmatpush.msra.mxu0 %v235
    %239 = vmatpush.msra.mxu0 %v234
    %240 = vmatpush.msra.mxu0 %v233
    %241 = vmatpush.msra.mxu0 %v232
    %242 = vmatpush.msra.mxu0 %v231
    %243 = vmatpush.msra.mxu0 %v230
    %244 = vmatpush.msra.mxu0 %v229
    %245 = vmatpush.msra.mxu0 %v228
    %246 = vmatpush.msra.mxu0 %v227
    %247 = vmatpush.msra.mxu0 %v226
    %248 = vmatpush.msra.mxu0 %v225
    %249 = vmatpush.msra.mxu0 %v224
    %250 = vmatpush.msra.mxu0 %v223
    %251 = vmatpush.msra.mxu0 %v222
    %252 = vmatpush.msra.mxu0 %v221
    %253 = vmatmul.f32.gmra.mxu0 %v219
    %v254 = vpop.f32.mrf.mxu0
    %v255 = vadd.f32 128.0, %v254
    %256 = vmatmul.f32.gmra.mxu0 %v220
    %v257 = vpop.f32.mrf.mxu0
    %v258 = vadd.f32 128.0, %v257
    %259 = vdwg.mxu0
    %v260 = vld [vmem:[#allocation7] sm:$0xff]
    %v261 = vld [vmem:[#allocation7 + $0x8] sm:$0xff]
    %v262 = vld [vmem:[#allocation7 + $0x10] sm:$0xff]
    %v263 = vld [vmem:[#allocation7 + $0x18] sm:$0xff]
    %v264 = vld [vmem:[#allocation7 + $0x20] sm:$0xff]
    %v265 = vld [vmem:[#allocation7 + $0x28] sm:$0xff]
    %v266 = vld [vmem:[#allocation7 + $0x30] sm:$0xff]
    %v267 = vld [vmem:[#allocation7 + $0x38] sm:$0xff]
    %v268 = vld [vmem:[#allocation7 + $0x40] sm:$0xff]
    %v269 = vld [vmem:[#allocation7 + $0x48] sm:$0xff]
    %v270 = vld [vmem:[#allocation7 + $0x50] sm:$0xff]
    %v271 = vld [vmem:[#allocation7 + $0x58] sm:$0xff]
    %v272 = vld [vmem:[#allocation7 + $0x60] sm:$0xff]
    %v273 = vld [vmem:[#allocation7 + $0x68] sm:$0xff]
    %v274 = vld [vmem:[#allocation7 + $0x70] sm:$0xff]
    %v275 = vld [vmem:[#allocation7 + $0x78] sm:$0xff]
    %276 = vmatpush.msra.mxu0 %v275
    %277 = vmatpush.msra.mxu0 %v274
    %278 = vmatpush.msra.mxu0 %v273
    %279 = vmatpush.msra.mxu0 %v272
    %280 = vmatpush.msra.mxu0 %v271
    %281 = vmatpush.msra.mxu0 %v270
    %282 = vmatpush.msra.mxu0 %v269
    %283 = vmatpush.msra.mxu0 %v268
    %284 = vmatpush.msra.mxu0 %v267
    %285 = vmatpush.msra.mxu0 %v266
    %286 = vmatpush.msra.mxu0 %v265
    %287 = vmatpush.msra.mxu0 %v264
    %288 = vmatpush.msra.mxu0 %v263
    %289 = vmatpush.msra.mxu0 %v262
    %290 = vmatpush.msra.mxu0 %v261
    %291 = vmatpush.msra.mxu0 %v260
    %292 = vmatmul.f32.gmra.mxu0 %v168
    %v293 = vpop.f32.mrf.mxu0
    %v294 = vadd.f32 0.0, %v293
    %295 = vmatmul.f32.gmra.mxu0 %v169
    %v296 = vpop.f32.mrf.mxu0
    %v297 = vadd.f32 0.0, %v296
    %298 = vmatmul.f32.gmra.mxu0 %v178
    %v299 = vpop.f32.mrf.mxu0
    %v300 = vadd.f32 0.0, %v299
    %301 = vmatmul.f32.gmra.mxu0 %v179
    %v302 = vpop.f32.mrf.mxu0
    %v303 = vadd.f32 0.0, %v302
    %304 = vdwg.mxu0
    %v305 = vround.ne.pseudo %v294
    %v306 = vround.ne.pseudo %v297
    %v307 = vround.ne.pseudo %v300
    %v308 = vround.ne.pseudo %v303
    %v309 = vld [vmem:[#allocation10] sm:$0xff]
    %v310 = vld [vmem:[#allocation10 + $0x8] sm:$0xff]
    %v311 = vld [vmem:[#allocation10 + $0x10] sm:$0xff]
    %v312 = vld [vmem:[#allocation10 + $0x18] sm:$0xff]
    %v313 = vld [vmem:[#allocation10 + $0x20] sm:$0xff]
    %v314 = vld [vmem:[#allocation10 + $0x28] sm:$0xff]
    %v315 = vld [vmem:[#allocation10 + $0x30] sm:$0xff]
    %v316 = vld [vmem:[#allocation10 + $0x38] sm:$0xff]
    %v317 = vld [vmem:[#allocation10 + $0x40] sm:$0xff]
    %v318 = vld [vmem:[#allocation10 + $0x48] sm:$0xff]
    %v319 = vld [vmem:[#allocation10 + $0x50] sm:$0xff]
    %v320 = vld [vmem:[#allocation10 + $0x58] sm:$0xff]
    %v321 = vld [vmem:[#allocation10 + $0x60] sm:$0xff]
    %v322 = vld [vmem:[#allocation10 + $0x68] sm:$0xff]
    %v323 = vld [vmem:[#allocation10 + $0x70] sm:$0xff]
    %v324 = vld [vmem:[#allocation10 + $0x78] sm:$0xff]
    %325 = vmatpush.msra.mxu0 %v324
    %326 = vmatpush.msra.mxu0 %v323
    %327 = vmatpush.msra.mxu0 %v322
    %328 = vmatpush.msra.mxu0 %v321
    %329 = vmatpush.msra.mxu0 %v320
    %330 = vmatpush.msra.mxu0 %v319
    %331 = vmatpush.msra.mxu0 %v318
    %332 = vmatpush.msra.mxu0 %v317
    %333 = vmatpush.msra.mxu0 %v316
    %334 = vmatpush.msra.mxu0 %v315
    %335 = vmatpush.msra.mxu0 %v314
    %336 = vmatpush.msra.mxu0 %v313
    %337 = vmatpush.msra.mxu0 %v312
    %338 = vmatpush.msra.mxu0 %v311
    %339 = vmatpush.msra.mxu0 %v310
    %340 = vmatpush.msra.mxu0 %v309
    %341 = vmatmul.f32.gmra.mxu0 %v305
    %v342 = vpop.f32.mrf.mxu0
    %v343 = vadd.f32 0.0, %v342
    %344 = vmatmul.f32.gmra.mxu0 %v306
    %v345 = vpop.f32.mrf.mxu0
    %v346 = vadd.f32 0.0, %v345
    %347 = vmatmul.f32.gmra.mxu0 %v307
    %v348 = vpop.f32.mrf.mxu0
    %v349 = vadd.f32 0.0, %v348
    %350 = vmatmul.f32.gmra.mxu0 %v308
    %v351 = vpop.f32.mrf.mxu0
    %v352 = vadd.f32 0.0, %v351
    %353 = vdwg.mxu0
    %v354 = vmul.f32 %v349, 1.402
    %v355 = vmul.f32 %v352, 1.402
    %v356 = vadd.f32 %v255, %v354
    %v357 = vadd.f32 %v258, %v355
    %v358 = vround.ne.pseudo %v356
    %v359 = vround.ne.pseudo %v357
    %v360 = vmax.f32 %v358, 0.0
    %v361 = vmax.f32 %v359, 0.0
    %v362 = vmin.f32 %v360, 255.0
    %v363 = vmin.f32 %v361, 255.0
    %v364 = vmul.f32 %v343, 0.344136
    %v365 = vmul.f32 %v346, 0.344136
    %v366 = vsub.f32 %v255, %v364
    %v367 = vsub.f32 %v258, %v365
    %v368 = vmul.f32 %v349, 0.714136
    %v369 = vmul.f32 %v352, 0.714136
    %v370 = vsub.f32 %v366, %v368
    %v371 = vsub.f32 %v367, %v369
    %v372 = vround.ne.pseudo %v370
    %v373 = vround.ne.pseudo %v371
    %v374 = vmax.f32 %v372, 0.0
    %v375 = vmax.f32 %v373, 0.0
    %v376 = vmin.f32 %v374, 255.0
    %v377 = vmin.f32 %v375, 255.0
    %v378 = vmul.f32 %v343, 1.772
    %v379 = vmul.f32 %v346, 1.772
    %v380 = vadd.f32 %v255, %v378
    %v381 = vadd.f32 %v258, %v379
    %v382 = vround.ne.pseudo %v380
    %v383 = vround.ne.pseudo %v381
    %v384 = vmax.f32 %v382, 0.0
    %v385 = vmax.f32 %v383, 0.0
    %v386 = vmin.f32 %v384, 255.0
    %v387 = vmin.f32 %v385, 255.0
    %v388 = vld [vmem:[#allocation11] sm:$0x1]
    %v389 = vld [vmem:[#allocation11 + $0x1] sm:$0x1]
    %v390 = vld [vmem:[#allocation11 + $0x2] sm:$0x1]
    %v391 = vld [vmem:[#allocation11 + $0x3] sm:$0x1]
    %v392 = vld [vmem:[#allocation11 + $0x4] sm:$0x1]
    %v393 = vld [vmem:[#allocation11 + $0x5] sm:$0x1]
    %v394 = vld [vmem:[#allocation11 + $0x6] sm:$0x1]
    %v395 = vld [vmem:[#allocation11 + $0x7] sm:$0x1]
    %v396 = vld [vmem:[#allocation11 + $0x8] sm:$0x1]
    %v397 = vld [vmem:[#allocation11 + $0x9] sm:$0x1]
    %v398 = vld [vmem:[#allocation11 + $0xa] sm:$0x1]
    %v399 = vld [vmem:[#allocation11 + $0xb] sm:$0x1]
    %v400 = vld [vmem:[#allocation11 + $0xc] sm:$0x1]
    %v401 = vld [vmem:[#allocation11 + $0xd] sm:$0x1]
    %v402 = vld [vmem:[#allocation11 + $0xe] sm:$0x1]
    %v403 = vld [vmem:[#allocation11 + $0xf] sm:$0x1]
    %v404 = vld [vmem:[#allocation11 + $0x10] sm:$0x1]
    %v405 = vld [vmem:[#allocation11 + $0x11] sm:$0x1]
    %v406 = vld [vmem:[#allocation11 + $0x12] sm:$0x1]
    %v407 = vld [vmem:[#allocation11 + $0x13] sm:$0x1]
    %v408 = vld [vmem:[#allocation11 + $0x14] sm:$0x1]
    %v409 = vld [vmem:[#allocation11 + $0x15] sm:$0x1]
    %v410 = vld [vmem:[#allocation11 + $0x16] sm:$0x1]
    %v411 = vld [vmem:[#allocation11 + $0x17] sm:$0x1]
    %v420 = vperm.slane %v388, 0
    %v421 = vperm.slane %v389, 0
    %v422 = vperm.slane %v390, 0
    %v423 = vperm.slane %v391, 0
    %v424 = vperm.slane %v392, 0
    %v425 = vperm.slane %v393, 0
    %v426 = vperm.slane %v394, 0
    %v427 = vperm.slane %v395, 0
    %v436 = vmul.f32 %v420, %v362
    %v437 = vmul.f32 %v420, %v363
    %v438 = vmul.f32 %v421, %v362
    %v439 = vmul.f32 %v421, %v363
    %v440 = vmul.f32 %v422, %v362
    %v441 = vmul.f32 %v422, %v363
    %v442 = vmul.f32 %v423, %v362
    %v443 = vmul.f32 %v423, %v363
    %v444 = vmul.f32 %v424, %v362
    %v445 = vmul.f32 %v424, %v363
    %v446 = vmul.f32 %v425, %v362
    %v447 = vmul.f32 %v425, %v363
    %v448 = vmul.f32 %v426, %v362
    %v449 = vmul.f32 %v426, %v363
    %v450 = vmul.f32 %v427, %v362
    %v451 = vmul.f32 %v427, %v363
    %v460 = vperm.slane %v396, 0
    %v461 = vperm.slane %v397, 0
    %v462 = vperm.slane %v398, 0
    %v463 = vperm.slane %v399, 0
    %v464 = vperm.slane %v400, 0
    %v465 = vperm.slane %v401, 0
    %v466 = vperm.slane %v402, 0
    %v467 = vperm.slane %v403, 0
    %v476 = vmul.f32 %v460, %v376
    %v477 = vmul.f32 %v460, %v377
    %v478 = vmul.f32 %v461, %v376
    %v479 = vmul.f32 %v461, %v377
    %v480 = vmul.f32 %v462, %v376
    %v481 = vmul.f32 %v462, %v377
    %v482 = vmul.f32 %v463, %v376
    %v483 = vmul.f32 %v463, %v377
    %v484 = vmul.f32 %v464, %v376
    %v485 = vmul.f32 %v464, %v377
    %v486 = vmul.f32 %v465, %v376
    %v487 = vmul.f32 %v465, %v377
    %v488 = vmul.f32 %v466, %v376
    %v489 = vmul.f32 %v466, %v377
    %v490 = vmul.f32 %v467, %v376
    %v491 = vmul.f32 %v467, %v377
    %v492 = vadd.f32 %v436, %v476
    %v493 = vadd.f32 %v437, %v477
    %v494 = vadd.f32 %v438, %v478
    %v495 = vadd.f32 %v439, %v479
    %v496 = vadd.f32 %v440, %v480
    %v497 = vadd.f32 %v441, %v481
    %v498 = vadd.f32 %v442, %v482
    %v499 = vadd.f32 %v443, %v483
    %v500 = vadd.f32 %v444, %v484
    %v501 = vadd.f32 %v445, %v485
    %v502 = vadd.f32 %v446, %v486
    %v503 = vadd.f32 %v447, %v487
    %v504 = vadd.f32 %v448, %v488
    %v505 = vadd.f32 %v449, %v489
    %v506 = vadd.f32 %v450, %v490
    %v507 = vadd.f32 %v451, %v491
    %v516 = vperm.slane %v404, 0
    %v517 = vperm.slane %v405, 0
    %v518 = vperm.slane %v406, 0
    %v519 = vperm.slane %v407, 0
    %v520 = vperm.slane %v408, 0
    %v521 = vperm.slane %v409, 0
    %v522 = vperm.slane %v410, 0
    %v523 = vperm.slane %v411, 0
    %v532 = vmul.f32 %v516, %v386
    %v533 = vmul.f32 %v516, %v387
    %v534 = vmul.f32 %v517, %v386
    %v535 = vmul.f32 %v517, %v387
    %v536 = vmul.f32 %v518, %v386
    %v537 = vmul.f32 %v518, %v387
    %v538 = vmul.f32 %v519, %v386
    %v539 = vmul.f32 %v519, %v387
    %v540 = vmul.f32 %v520, %v386
    %v541 = vmul.f32 %v520, %v387
    %v542 = vmul.f32 %v521, %v386
    %v543 = vmul.f32 %v521, %v387
    %v544 = vmul.f32 %v522, %v386
    %v545 = vmul.f32 %v522, %v387
    %v546 = vmul.f32 %v523, %v386
    %v547 = vmul.f32 %v523, %v387
    %v548 = vadd.f32 %v492, %v532
    %v549 = vadd.f32 %v493, %v533
    %v550 = vadd.f32 %v494, %v534
    %v551 = vadd.f32 %v495, %v535
    %v552 = vadd.f32 %v496, %v536
    %v553 = vadd.f32 %v497, %v537
    %v554 = vadd.f32 %v498, %v538
    %v555 = vadd.f32 %v499, %v539
    %v556 = vadd.f32 %v500, %v540
    %v557 = vadd.f32 %v501, %v541
    %v558 = vadd.f32 %v502, %v542
    %v559 = vadd.f32 %v503, %v543
    %v560 = vadd.f32 %v504, %v544
    %v561 = vadd.f32 %v505, %v545
    %v562 = vadd.f32 %v506, %v546
    %v563 = vadd.f32 %v507, %v547
    %v564 = vld [vmem:[#allocation13] sm:$0x1]
    %v565 = vld [vmem:[#allocation13 + $0x1] sm:$0x1]
    %v566 = vld [vmem:[#allocation13 + $0x2] sm:$0x1]
    %v567 = vld [vmem:[#allocation13 + $0x3] sm:$0x1]
    %v568 = vld [vmem:[#allocation13 + $0x4] sm:$0x1]
    %v569 = vld [vmem:[#allocation13 + $0x5] sm:$0x1]
    %v570 = vld [vmem:[#allocation13 + $0x6] sm:$0x1]
    %v571 = vld [vmem:[#allocation13 + $0x7] sm:$0x1]
    %v580 = vperm.slane %v564, 0
    %v581 = vperm.slane %v565, 0
    %v582 = vperm.slane %v566, 0
    %v583 = vperm.slane %v567, 0
    %v584 = vperm.slane %v568, 0
    %v585 = vperm.slane %v569, 0
    %v586 = vperm.slane %v570, 0
    %v587 = vperm.slane %v571, 0
    %v596 = vadd.f32 %v548, %v580
    %v597 = vadd.f32 %v549, %v580
    %v598 = vadd.f32 %v550, %v581
    %v599 = vadd.f32 %v551, %v581
    %v600 = vadd.f32 %v552, %v582
    %v601 = vadd.f32 %v553, %v582
    %v602 = vadd.f32 %v554, %v583
    %v603 = vadd.f32 %v555, %v583
    %v604 = vadd.f32 %v556, %v584
    %v605 = vadd.f32 %v557, %v584
    %v606 = vadd.f32 %v558, %v585
    %v607 = vadd.f32 %v559, %v585
    %v608 = vadd.f32 %v560, %v586
    %v609 = vadd.f32 %v561, %v586
    %v610 = vadd.f32 %v562, %v587
    %v611 = vadd.f32 %v563, %v587
    %612 = vst [vmem:[#allocation14] sm:$0xff] %v596
    %613 = vst [vmem:[#allocation14 + $0x8] sm:$0xff] %v597
    %614 = vst [vmem:[#allocation14 + $0x10] sm:$0xff] %v598
    %615 = vst [vmem:[#allocation14 + $0x18] sm:$0xff] %v599
    %616 = vst [vmem:[#allocation14 + $0x20] sm:$0xff] %v600
    %617 = vst [vmem:[#allocation14 + $0x28] sm:$0xff] %v601
    %618 = vst [vmem:[#allocation14 + $0x30] sm:$0xff] %v602
    %619 = vst [vmem:[#allocation14 + $0x38] sm:$0xff] %v603
    %620 = vst [vmem:[#allocation14 + $0x40] sm:$0xff] %v604
    %621 = vst [vmem:[#allocation14 + $0x48] sm:$0xff] %v605
    %622 = vst [vmem:[#allocation14 + $0x50] sm:$0xff] %v606
    %623 = vst [vmem:[#allocation14 + $0x58] sm:$0xff] %v607
    %624 = vst [vmem:[#allocation14 + $0x60] sm:$0xff] %v608
    %625 = vst [vmem:[#allocation14 + $0x68] sm:$0xff] %v609
    %626 = vst [vmem:[#allocation14 + $0x70] sm:$0xff] %v610
    %627 = vst [vmem:[#allocation14 + $0x78] sm:$0xff] %v611
    // Predicated region
    $region58: #{tpu_custom_call.1} parent=1 // pred_check
      _
    $region59: #{tpu_custom_call.1} parent=1 // pred_check_branch
      %629 = sbr.rel (0) target = $region61
    $region60: #{tpu_custom_call.1} parent=1 // pred_region
      %631 = vsyncadd [#allocation4], 0
      %s632 = sshll.u32 [#allocation14], 4
      %s633 = int_to_ptr.vmem [resolvable:$true] %s632
      %s634 = sshll.u32 %s7, 4
      %s635 = int_to_ptr.hbm [resolvable:$true] %s634
      %640 = dma.vmem_to_hbm [thread:$0]  %s633, 2048, %s635, [#allocation4], 128, 128, 8
    $region61: #{tpu_custom_call.1} parent=1 // pred_fallthru
      _
    // Predicated region
    $region62: #{tpu_custom_call.1} parent=1 // pred_check
      _
    $region63: #{tpu_custom_call.1} parent=1 // pred_check_branch
      %642 = sbr.rel (0) target = $region65
    $region64: #{tpu_custom_call.1} parent=1 // pred_region
      %644 = dma.done [#allocation4], 2048
    $region65: #{tpu_custom_call.1} parent=1 // pred_fallthru
      _
    %645 = vsyncpa [#allocation3], 1
    %646 = vsyncpa [#allocation6], 1
    %647 = vsyncpa [#allocation9], 1
    %648 = vsyncpa [#allocation12], 1
    %649 = vsyncpa [#allocation4], 1

</llo_original>
